<compile_context>
chip_gen: v7x
topology: tpu7x:2x2x1
jax: 0.10.0
libtpu: 0.0.40
codegen_flags: <defaults>
</compile_context>

<pallas_src>
import jax
import jax.numpy as jnp
from jax.experimental import pallas as pl
from jax.experimental.pallas import tpu as pltpu


def _round_up(v, m):
    return -(-v // m) * m


def _conv_matmul_kernel(x_ref, w_ref, b_ref, o_ref, acc_ref):
    """One (tm, tk) @ (tk, tn) MXU step; K is the innermost (reduction) axis."""
    @pl.when(pl.program_id(2) == 0)
    def _init():
        acc_ref[...] = jnp.zeros_like(acc_ref)

    acc_ref[...] += jnp.dot(x_ref[...], w_ref[...],
                            preferred_element_type=jnp.float32)

    @pl.when(pl.program_id(2) == pl.num_programs(2) - 1)
    def _finalize():
        # bias block is (1, tn) float32; broadcast-add then cast once.
        o_ref[...] = (acc_ref[...] + b_ref[...]).astype(o_ref.dtype)


def downsampling_forward(x, weight, bias, *, stride=1, padding=0,
                         pre_permute=False, compute_dtype=None,
                         block_m=512, block_n=None, block_k=None,
                         vmem_budget_bytes=None):
    """Forward pass of Downsampling (Identity pre/post norms).

    x:      (N, C_in, H, W)  NCHW   (or NHWC if pre_permute=True)
    weight: (C_out, C_in, KH, KW)   PyTorch Conv2d layout
    bias:   (C_out,)
    compute_dtype: optional MXU input dtype (e.g. jnp.bfloat16); accumulation
                   is always f32 and the output keeps x.dtype.
    returns (N, H_out, W_out, C_out)  NHWC, i.e. conv(x).permute(0, 2, 3, 1)
    """
    if pre_permute:
        x = jnp.transpose(x, (0, 3, 1, 2))  # NHWC -> NCHW, as in the module

    N, Cin, H, W = x.shape
    Cout, Cin_w, KH, KW = weight.shape
    assert Cin == Cin_w, (Cin, Cin_w)

    Ho = (H + 2 * padding - KH) // stride + 1
    Wo = (W + 2 * padding - KW) // stride + 1

    out_dtype = x.dtype
    cdtype = jnp.dtype(compute_dtype) if compute_dtype is not None else jnp.dtype(x.dtype)
    ci = cdtype.itemsize
    co = jnp.dtype(out_dtype).itemsize

    # ---------------- im2col (wrapper-side layout plumbing, NHWC) -----------
    x_nhwc = jnp.transpose(x, (0, 2, 3, 1))  # (N, H, W, Cin)
    if padding > 0:
        x_nhwc = jnp.pad(
            x_nhwc, ((0, 0), (padding, padding), (padding, padding), (0, 0)))
    cols = []
    for kh in range(KH):
        for kw in range(KW):
            cols.append(x_nhwc[:, kh:kh + stride * Ho:stride,
                                  kw:kw + stride * Wo:stride, :])
    patches = jnp.concatenate(cols, axis=-1)          # (N, Ho, Wo, KH*KW*Cin)
    K = KH * KW * Cin
    M = N * Ho * Wo
    patches = patches.reshape(M, K).astype(cdtype)

    # Weights -> (K, Cout) with (kh, kw, cin) index order matching im2col.
    w2d = jnp.transpose(weight, (2, 3, 1, 0)).reshape(K, Cout).astype(cdtype)
    bias_f32 = bias.astype(jnp.float32)               # bias stays f32 end-to-end

    # ---------------- tile sizes / VMEM budget -------------------------------
    K_pad = _round_up(K, 128)                          # lane-dense K
    Npad = _round_up(Cout, 128)                        # lane-dense output

    # Output-channel tile: keep the whole weight matrix resident when small.
    if block_n is not None:
        tn = min(_round_up(block_n, 128), Npad)
    elif 2 * K_pad * Npad * ci <= (12 << 20) and Npad <= 2048:
        tn = Npad                                      # weights resident in VMEM
    else:
        tn = 256 if Npad % 256 == 0 else 128
    Npad2 = _round_up(Npad, tn)
    n_j = Npad2 // tn

    pack = {4: 8, 2: 16, 1: 32}
    sublane_m = max(pack.get(ci, 8), pack.get(co, 8))
    tm = min(_round_up(block_m, sublane_m), _round_up(M, sublane_m))

    try:
        vmem_phys = int(pltpu.get_tpu_info().vmem_capacity_bytes)
    except Exception:
        vmem_phys = 64 << 20                           # conservative (v7x-sized)
    budget = (int(vmem_budget_bytes) if vmem_budget_bytes
              else min(int(0.45 * vmem_phys), 48 << 20))

    def _footprint(tm_, tk_, tn_):
        # double-buffered inputs/outputs + f32 accumulator scratch + bias.
        return (2 * tm_ * tk_ * ci + 2 * tk_ * tn_ * ci
                + 2 * tm_ * tn_ * co + tm_ * tn_ * 4 + 2 * Npad2 * 4)

    # K tile: whole K if it fits, otherwise shrink (multiples of 128), then
    # shrink the M tile as a last resort.
    tk = K_pad if block_k is None else min(_round_up(block_k, 128), K_pad)
    while _footprint(tm, tk, tn) > budget and tk > 128:
        tk = _round_up(tk // 2, 128)
    while _footprint(tm, tk, tn) > budget and tm > sublane_m:
        tm = _round_up(tm // 2, sublane_m)

    # Megacore: give both TensorCores work when the problem is big enough.
    Ms = _round_up(M, sublane_m)
    if n_j * (-(-Ms // tm)) < 2 and Ms >= 2 * sublane_m:
        tm = _round_up(-(-Ms // 2), sublane_m)

    Mpad = _round_up(M, tm)
    K_pad2 = _round_up(K_pad, tk)
    n_i = Mpad // tm
    n_k = K_pad2 // tk

    # ---------------- zero padding (numerically exact) ----------------------
    patches = jnp.pad(patches, ((0, Mpad - M), (0, K_pad2 - K)))
    w2d = jnp.pad(w2d, ((0, K_pad2 - K), (0, Npad2 - Cout)))
    bias2d = jnp.pad(bias_f32, (0, Npad2 - Cout)).reshape(1, Npad2)

    if n_j == 1:
        # Whole bias, constant index map -> fetched exactly once.
        bias_spec = pl.BlockSpec((1, Npad2), lambda i, j, k: (0, 0))
    else:
        bias_spec = pl.BlockSpec((1, tn), lambda i, j, k: (0, j))

    cost = pl.CostEstimate(
        flops=2 * Mpad * K_pad2 * Npad2,
        transcendentals=0,
        bytes_accessed=(Mpad * K_pad2 * ci + K_pad2 * Npad2 * ci
                        + Mpad * Npad2 * co + Npad2 * 4),
    )
    vmem_limit = int(min(max(_footprint(tm, tk, tn) + (8 << 20), 24 << 20),
                         int(0.9 * vmem_phys)))

    out2d = pl.pallas_call(
        _conv_matmul_kernel,
        out_shape=jax.ShapeDtypeStruct((Mpad, Npad2), out_dtype),
        grid_spec=pltpu.PrefetchScalarGridSpec(
            num_scalar_prefetch=0,
            grid=(n_i, n_j, n_k),                       # K innermost (reduction)
            in_specs=[
                pl.BlockSpec((tm, tk), lambda i, j, k: (i, k)),   # patches
                pl.BlockSpec((tk, tn), lambda i, j, k: (k, j)),   # weights
                bias_spec,                                        # bias (f32)
            ],
            out_specs=pl.BlockSpec((tm, tn), lambda i, j, k: (i, j)),
            scratch_shapes=[pltpu.VMEM((tm, tn), jnp.float32)],   # f32 accumulator
        ),
        compiler_params=pltpu.CompilerParams(
            dimension_semantics=("parallel", "parallel", "arbitrary"),
            vmem_limit_bytes=vmem_limit,
        ),
        cost_estimate=cost,
    )(patches, w2d, bias2d)

    return out2d[:M, :Cout].reshape(N, Ho, Wo, Cout)   # already NHWC


def downsampling_ref(x, weight, bias, stride, padding):
    """Pure-JAX reference: Conv2d (NCHW) + bias, then permute to NHWC."""
    y = jax.lax.conv_general_dilated(
        x, weight, window_strides=(stride, stride),
        padding=[(padding, padding), (padding, padding)],
        dimension_numbers=("NCHW", "OIHW", "NCHW"))
    y = y + bias[None, :, None, None]
    return jnp.transpose(y, (0, 2, 3, 1))


if __name__ == "__main__":
    key = jax.random.PRNGKey(0)
    k1, k2, k3, k4, k5, k6 = jax.random.split(key, 6)

    # --- Config 1: stage-transition downsampling (3x3, stride 2, pad 1) -----
    N, Cin, H, W = 2, 4, 16, 16
    Cout, ks, st, pd = 8, 3, 2, 1
    x = jax.random.normal(k1, (N, Cin, H, W), dtype=jnp.float32)
    w = jax.random.normal(k2, (Cout, Cin, ks, ks), dtype=jnp.float32) * 0.1
    b = jax.random.normal(k3, (Cout,), dtype=jnp.float32) * 0.1

    out = jax.block_until_ready(downsampling_forward(x, w, b, stride=st, padding=pd))
    ref = downsampling_ref(x, w, b, st, pd)
    assert out.shape == ref.shape == (N, H // st, W // st, Cout), out.shape
    assert out.dtype == x.dtype
    assert jnp.allclose(out, ref, atol=2e-3, rtol=2e-3), float(
        jnp.max(jnp.abs(out - ref)))

    # Same conv on the bf16 MXU path (f32 accumulate, f32 bias, f32 output).
    out_bf = jax.block_until_ready(
        downsampling_forward(x, w, b, stride=st, padding=pd,
                             compute_dtype=jnp.bfloat16))
    assert out_bf.dtype == x.dtype
    assert jnp.allclose(out_bf, ref, atol=5e-2, rtol=5e-2), float(
        jnp.max(jnp.abs(out_bf - ref)))

    # --- Config 2: stem-like conv (7x7, stride 4, pad 2) --------------------
    # Exercises K zero-padding (147 -> 256) and stride/padding generality.
    N2, Cin2, H2, W2 = 1, 3, 16, 16
    Cout2, ks2, st2, pd2 = 16, 7, 4, 2
    x2 = jax.random.normal(k4, (N2, Cin2, H2, W2), dtype=jnp.float32)
    w2 = jax.random.normal(k5, (Cout2, Cin2, ks2, ks2), dtype=jnp.float32) * 0.05
    b2 = jax.random.normal(k6, (Cout2,), dtype=jnp.float32) * 0.1
    out2 = jax.block_until_ready(downsampling_forward(x2, w2, b2, stride=st2, padding=pd2))
    ref2 = downsampling_ref(x2, w2, b2, st2, pd2)
    assert out2.shape == ref2.shape, (out2.shape, ref2.shape)
    assert jnp.allclose(out2, ref2, atol=2e-3, rtol=2e-3), float(
        jnp.max(jnp.abs(out2 - ref2)))

    print("KERNEL_OK")
</pallas_src>

<mosaic_0001>
module attributes {stable_mosaic.version = 11 : i64} {
  func.func @_conv_matmul_kernel(%arg0: i32, %arg1: i32, %arg2: i32, %arg3: memref<64x128xf32, #tpu.memory_space<vmem>>, %arg4: memref<128x128xf32, #tpu.memory_space<vmem>>, %arg5: memref<1x128xf32, #tpu.memory_space<vmem>>, %arg6: memref<64x128xf32, #tpu.memory_space<vmem>>, %arg7: memref<64x128xf32, #tpu.memory_space<vmem>>) attributes {dimension_semantics = [#tpu.dimension_semantics<parallel>, #tpu.dimension_semantics<parallel>, #tpu.dimension_semantics<arbitrary>], iteration_bounds = array<i64: 2, 1, 1>, scalar_prefetch = 0 : i64, scratch_operands = 1 : i64, tpu.core_type = #tpu.core_type<tc>, window_params = [{transform_indices = @transform_0, window_bounds = array<i64: 64, 128>}, {transform_indices = @transform_1, window_bounds = array<i64: 128, 128>}, {pipeline_mode = #tpu.pipeline_mode<synchronous>, transform_indices = @transform_2, window_bounds = array<i64: 1, 128>}, {transform_indices = @transform_3, window_bounds = array<i64: 64, 128>}]} {
    %c0_i32 = arith.constant 0 : i32
    %0 = arith.cmpi eq, %arg2, %c0_i32 : i32
    %1 = arith.extui %0 : i1 to i32
    %c0_i32_0 = arith.constant 0 : i32
    %2 = arith.cmpi ne, %1, %c0_i32_0 : i32
    scf.if %2 {
      %cst_10 = arith.constant 0.000000e+00 : f32
      %12 = vector.broadcast %cst_10 : f32 to vector<64x128xf32>
      %c0_11 = arith.constant 0 : index
      %c0_12 = arith.constant 0 : index
      %13 = vector.load %arg7[%c0_11, %c0_12] : memref<64x128xf32, #tpu.memory_space<vmem>>, vector<64x128xf32>
      tpu.vector_store %arg7[%c0_11, %c0_12], %12 {strides = array<i32>} : memref<64x128xf32, #tpu.memory_space<vmem>>, vector<64x128xf32>,
    } else {
    }
    %c0 = arith.constant 0 : index
    %c0_1 = arith.constant 0 : index
    %3 = vector.load %arg7[%c0, %c0_1] : memref<64x128xf32, #tpu.memory_space<vmem>>, vector<64x128xf32>
    %c0_2 = arith.constant 0 : index
    %c0_3 = arith.constant 0 : index
    %4 = vector.load %arg3[%c0_2, %c0_3] : memref<64x128xf32, #tpu.memory_space<vmem>>, vector<64x128xf32>
    %c0_4 = arith.constant 0 : index
    %c0_5 = arith.constant 0 : index
    %5 = vector.load %arg4[%c0_4, %c0_5] : memref<128x128xf32, #tpu.memory_space<vmem>>, vector<128x128xf32>
    %cst = arith.constant dense<0.000000e+00> : vector<64x128xf32>
    %6 = tpu.matmul %4, %5, %cst {dimension_numbers = #tpu.dot_dimension_numbers<[1], [0], [0], [1], [0, 0, 1, 1], [], []>} : vector<64x128xf32>, vector<128x128xf32>, vector<64x128xf32> -> vector<64x128xf32>
    %7 = arith.addf %3, %6 : vector<64x128xf32>
    %c0_6 = arith.constant 0 : index
    %c0_7 = arith.constant 0 : index
    %8 = vector.load %arg7[%c0_6, %c0_7] : memref<64x128xf32, #tpu.memory_space<vmem>>, vector<64x128xf32>
    tpu.vector_store %arg7[%c0_6, %c0_7], %7 {strides = array<i32>} : memref<64x128xf32, #tpu.memory_space<vmem>>, vector<64x128xf32>,
    %c0_i32_8 = arith.constant 0 : i32
    %9 = arith.cmpi eq, %arg2, %c0_i32_8 : i32
    %10 = arith.extui %9 : i1 to i32
    %c0_i32_9 = arith.constant 0 : i32
    %11 = arith.cmpi ne, %10, %c0_i32_9 : i32
    scf.if %11 {
      %c0_10 = arith.constant 0 : index
      %c0_11 = arith.constant 0 : index
      %12 = vector.load %arg7[%c0_10, %c0_11] : memref<64x128xf32, #tpu.memory_space<vmem>>, vector<64x128xf32>
      %c0_12 = arith.constant 0 : index
      %c0_13 = arith.constant 0 : index
      %13 = vector.load %arg5[%c0_12, %c0_13] : memref<1x128xf32, #tpu.memory_space<vmem>>, vector<1x128xf32>
      %14 = vector.broadcast %13 : vector<1x128xf32> to vector<64x128xf32>
      %15 = arith.addf %12, %14 : vector<64x128xf32>
      %c0_14 = arith.constant 0 : index
      %c0_15 = arith.constant 0 : index
      %16 = vector.load %arg6[%c0_14, %c0_15] : memref<64x128xf32, #tpu.memory_space<vmem>>, vector<64x128xf32>
      tpu.vector_store %arg6[%c0_14, %c0_15], %15 {strides = array<i32>} : memref<64x128xf32, #tpu.memory_space<vmem>>, vector<64x128xf32>,
    } else {
    }
    return
  }
  func.func @transform_0(%arg0: i32, %arg1: i32, %arg2: i32) -> (i32, i32) {
    %c0_i32 = arith.constant 0 : i32
    return %arg0, %arg2 : i32, i32
  }
  func.func @transform_1(%arg0: i32, %arg1: i32, %arg2: i32) -> (i32, i32) {
    %c0_i32 = arith.constant 0 : i32
    return %arg2, %arg1 : i32, i32
  }
  func.func @transform_2(%arg0: i32, %arg1: i32, %arg2: i32) -> (i32, i32) {
    %c0_i32 = arith.constant 0 : i32
    %c0_i32_0 = arith.constant 0 : i32
    %c0_i32_1 = arith.constant 0 : i32
    return %c0_i32, %c0_i32_0 : i32, i32
  }
  func.func @transform_3(%arg0: i32, %arg1: i32, %arg2: i32) -> (i32, i32) {
    %c0_i32 = arith.constant 0 : i32
    return %arg0, %arg1 : i32, i32
  }
}

</mosaic_0001>

<llo_original>
// kernel: tpu_custom_call.1
$region0: #{tpu_custom_call.1}
  #allocation0 [shape = 'u32[]', space=smem, size = 0x4, offset = 0x4, fixed_abs, tag = 'smem constant byte address 0x4 - core index']
  #allocation1 [shape = 'u32[144,128]{1,0:T(1,128)}', space=vmem, size = 0x12000, scoped, tag = 'internal scratch']
  #allocation2 [shape = 'f32[64,128]{1,0:T(8,128)}', space=vmem, size = 0x8000, scoped, tag = 'scratch operand']
  %s0 = inlined_call_operand.hbm [shape: f32[128,128], index: 0, kind: input, shape index: {}]
  %s1 = inlined_call_operand.hbm [shape: f32[128,128], index: 1, kind: input, shape index: {}]
  %s2 = inlined_call_operand.vmem [shape: f32[1,128], index: 2, kind: input, shape index: {}]
  %s3 = inlined_call_operand.hbm [shape: f32[128,128], index: 3, kind: output, shape index: {}]
  %s4 = sld [smem:[#allocation0]]
  $region61: #{tpu_custom_call.1} parent=0
    _
  %s6 = ssub.s32 1, %s4
  %s7 = scalar_select 0, %s6, %s4
  $region1: #{tpu_custom_call.1} parent=0
    #allocation3 [shape = 'u8[65536]{0}', space=vmem, size = 0x10000, scoped, tag = 'input window, operand 0']
    #allocation4 [shape = 's32[2]{0}', space=sflag, size = 0x8, scoped, tag = 'scoped memory for tpu_custom_call.1']
    #allocation5 [shape = 's32[2]{0}', space=sflag, size = 0x8, scoped, tag = 'scoped memory for tpu_custom_call.1']
    #allocation6 [shape = 'u8[65536]{0}', space=vmem, size = 0x10000, scoped, tag = 'input window, operand 1, single buffered']
    #allocation7 [shape = 's32[1]{0}', space=sflag, size = 0x4, scoped, tag = 'scoped memory for tpu_custom_call.1']
    #allocation8 [shape = 'u8[65536]{0}', space=vmem, size = 0x10000, scoped, tag = 'output window, operand 0']
    %8 = vsyncpa [#allocation4], 0
    %s9 = scalar_lea.sflag [#allocation4], 1
    %10 = vsyncpa %s9, 0
    %11 = vsyncpa [#allocation7], 0
    %12 = vsyncpa [#allocation5], 0
    %s13 = scalar_lea.sflag [#allocation5], 1
    %14 = vsyncpa %s13, 0
    loop: start=0, step=1, limit=4
    $region2: #{tpu_custom_call.1} parent=1 // loop_pre_header
      _
    $region3: #{tpu_custom_call.1} parent=1 // loop_header
      %s16 = sphi 0, %s20
      %p17 = scmp.ge.s32.totalorder %s16, 4
      %s23 = sphi 0, %s42
      %s24 = sphi 0, %s38
      %s25 = sphi 0, %s34
      %s26 = sphi 0, %s23
      %s27 = sphi 0, %s24
      %s28 = sphi 0, %s25
      %s29 = sphi 0, %s26
      %s30 = sphi 0, %s27
      %s31 = sphi 0, %s28
      %s47 = sphi 0, %s49
      %s50 = sphi 0, %s47
      %s51 = sphi 0, %s50
      %s67 = sphi 0, %s51
      %s75 = sphi 0, %s77
      %s78 = sphi 0, %s75
      %s79 = sphi 0, %s78
      %s95 = sphi 0, %s79
      %s99 = sphi 0, %s99
      %s101 = sphi 0, %s99
      %s102 = sphi 0, %s101
      %s116 = sphi 0, %s102
      %s124 = sphi 0, %s126
      %s127 = sphi 0, %s124
      %s128 = sphi 0, %s127
      %s144 = sphi 0, %s128
    $region4: #{tpu_custom_call.1} parent=1 // loop_header_branch
      %19 = sbr.rel (%p17) target = $region8
    $region5: #{tpu_custom_call.1} parent=1 // loop_body
      %s21 = ssub.s32 %s16, 1
      %s22 = ssub.s32 %s16, 2
      %s32 = sadd.s32 1, %s25
      %p33 = scmp.ge.s32.totalorder %s32, 1
      %s34 = scalar_select %p33, 0, %s32
      %s35 = sadd.s32 1, %s24
      %s36 = scalar_select %p33, %s35, %s24
      %p37 = scmp.ge.s32.totalorder %s36, 1
      %s38 = scalar_select %p37, 0, %s36
      %s39 = sadd.s32 1, %s23
      %s40 = scalar_select %p37, %s39, %s23
      %p41 = scmp.ge.s32.totalorder %s40, 2
      %s42 = scalar_select %p41, 0, %s40
      %s43 = ssub.s32 %s23, %s42
      %s44 = ssub.s32 %s25, %s34
      %s45 = sor.u32 %s43, %s44
      %p46 = scmp.eq.s32.totalorder %s45, 0
      %s48 = sadd.s32 %s47, 1
      %s49 = scalar_select %p46, %s47, %s48
      %p52 = pneg %p46
      %p53 = scmp.eq.s32.totalorder %s16, 1
      %p54 = por %p52, %p53
      %p55 = scmp.ne.s32.totalorder %s47, %s50
      %p56 = scmp.eq.s32.totalorder %s16, 0
      %p57 = por %p55, %p56
      %p58 = scmp.ne.s32.totalorder %s47, %s50
      %p59 = scmp.eq.s32.totalorder %s21, 1
      %p60 = por %p58, %p59
      %p61 = scmp.ne.s32.totalorder %s50, %s51
      %p62 = scmp.eq.s32.totalorder %s21, 0
      %p63 = por %p61, %p62
      %p64 = scmp.ne.s32.totalorder %s50, %s51
      %p65 = scmp.eq.s32.totalorder %s22, 1
      %p66 = por %p64, %p65
      %p68 = scmp.ne.s32.totalorder %s51, %s67
      %p69 = scmp.eq.s32.totalorder %s22, 0
      %p70 = por %p68, %p69
      %s71 = ssub.s32 %s25, %s34
      %s72 = ssub.s32 %s24, %s38
      %s73 = sor.u32 %s71, %s72
      %p74 = scmp.eq.s32.totalorder %s73, 0
      %s76 = sadd.s32 %s75, 1
      %s77 = scalar_select %p74, %s75, %s76
      %p80 = pneg %p74
      %p81 = scmp.eq.s32.totalorder %s16, 1
      %p82 = por %p80, %p81
      %p83 = scmp.ne.s32.totalorder %s75, %s78
      %p84 = scmp.eq.s32.totalorder %s16, 0
      %p85 = por %p83, %p84
      %p86 = scmp.ne.s32.totalorder %s75, %s78
      %p87 = scmp.eq.s32.totalorder %s21, 1
      %p88 = por %p86, %p87
      %p89 = scmp.ne.s32.totalorder %s78, %s79
      %p90 = scmp.eq.s32.totalorder %s21, 0
      %p91 = por %p89, %p90
      %p92 = scmp.ne.s32.totalorder %s78, %s79
      %p93 = scmp.eq.s32.totalorder %s22, 1
      %p94 = por %p92, %p93
      %p96 = scmp.ne.s32.totalorder %s79, %s95
      %p97 = scmp.eq.s32.totalorder %s22, 0
      %p98 = por %p96, %p97
      %s100 = sadd.s32 %s99, 1
      %p103 = scmp.eq.s32.totalorder %s16, 1
      %p104 = scmp.ne.s32.totalorder %s99, %s101
      %p105 = scmp.eq.s32.totalorder %s16, 0
      %p106 = por %p104, %p105
      %p107 = scmp.ne.s32.totalorder %s99, %s101
      %p108 = scmp.eq.s32.totalorder %s21, 1
      %p109 = por %p107, %p108
      %p110 = scmp.ne.s32.totalorder %s101, %s102
      %p111 = scmp.eq.s32.totalorder %s21, 0
      %p112 = por %p110, %p111
      %p113 = scmp.ne.s32.totalorder %s101, %s102
      %p114 = scmp.eq.s32.totalorder %s22, 1
      %p115 = por %p113, %p114
      %p117 = scmp.ne.s32.totalorder %s102, %s116
      %p118 = scmp.eq.s32.totalorder %s22, 0
      %p119 = por %p117, %p118
      %s120 = ssub.s32 %s23, %s42
      %s121 = ssub.s32 %s24, %s38
      %s122 = sor.u32 %s120, %s121
      %p123 = scmp.eq.s32.totalorder %s122, 0
      %s125 = sadd.s32 %s124, 1
      %s126 = scalar_select %p123, %s124, %s125
      %p129 = pneg %p123
      %p130 = scmp.eq.s32.totalorder %s16, 1
      %p131 = por %p129, %p130
      %p132 = scmp.ne.s32.totalorder %s124, %s127
      %p133 = scmp.eq.s32.totalorder %s16, 0
      %p134 = por %p132, %p133
      %p135 = scmp.ne.s32.totalorder %s124, %s127
      %p136 = scmp.eq.s32.totalorder %s21, 1
      %p137 = por %p135, %p136
      %p138 = scmp.ne.s32.totalorder %s127, %s128
      %p139 = scmp.eq.s32.totalorder %s21, 0
      %p140 = por %p138, %p139
      %p141 = scmp.ne.s32.totalorder %s127, %s128
      %p142 = scmp.eq.s32.totalorder %s22, 1
      %p143 = por %p141, %p142
      %p145 = scmp.ne.s32.totalorder %s128, %s144
      %p146 = scmp.eq.s32.totalorder %s22, 0
      %p147 = por %p145, %p146
      %p148 = scmp.le.s32.totalorder 1, %s16
      %p149 = scmp.lt.s32.totalorder %s16, 3
      %p150 = pnand %p148, %p149
      %p151 = pneg %p150
      // Predicated region
      $region9: #{tpu_custom_call.1} parent=5 // pred_check
        _
      $region10: #{tpu_custom_call.1} parent=5 // pred_check_branch
        %153 = sbr.rel (%p150) target = $region12
      $region11: #{tpu_custom_call.1} parent=5 // pred_region
        %s154 = ssub.s32 %s16, 1
        // Predicated region
        $region13: #{tpu_custom_call.1} parent=11 // pred_check
          %p155 = pneg %p91
        $region14: #{tpu_custom_call.1} parent=11 // pred_check_branch
          %157 = sbr.rel (%p155) target = $region16
        $region15: #{tpu_custom_call.1} parent=11 // pred_region
          %s158 = smul.u32 16, %s28
          %s160 = ssub.s32 2048, 2048
          %161 = vsyncadd [#allocation7], %s160
          %s162 = sadd.s32 %s27, %s158
          %s163 = smul.addr %s162, 128
          %s164 = scalar_lea.hbm %s1, %s163
          %s165 = sshll.u32 [#allocation6], 4
          %s166 = int_to_ptr.vmem [resolvable:$true] %s165
          %171 = dma.hbm_to_vmem [thread:$0]  %s164, 2048, %s166, [#allocation7], 128, 128, 8
        $region16: #{tpu_custom_call.1} parent=11 // pred_fallthru
          _
        // Predicated region
        $region17: #{tpu_custom_call.1} parent=11 // pred_check
          %p172 = pneg %p112
        $region18: #{tpu_custom_call.1} parent=11 // pred_check_branch
          %174 = sbr.rel (%p172) target = $region20
        $region19: #{tpu_custom_call.1} parent=11 // pred_region
          _
        $region20: #{tpu_custom_call.1} parent=11 // pred_fallthru
          _
      $region12: #{tpu_custom_call.1} parent=5 // pred_fallthru
        _
      %p175 = scmp.lt.s32.totalorder %s16, 2
      // Predicated region
      $region21: #{tpu_custom_call.1} parent=5 // pred_check
        %p176 = pneg %p175
      $region22: #{tpu_custom_call.1} parent=5 // pred_check_branch
        %178 = sbr.rel (%p176) target = $region24
      $region23: #{tpu_custom_call.1} parent=5 // pred_region
        // Predicated region
        $region25: #{tpu_custom_call.1} parent=23 // pred_check
          %p179 = pneg %p57
        $region26: #{tpu_custom_call.1} parent=23 // pred_check_branch
          %181 = sbr.rel (%p179) target = $region28
        $region27: #{tpu_custom_call.1} parent=23 // pred_region
          %s182 = sand.u32 %s47, 1
          %s183 = scalar_lea.sflag [#allocation4], %s182
          %s184 = sand.u32 %s47, 1
          %s185 = smul.addr %s184, 64
          %s186 = scalar_lea.vmem [#allocation3], %s185
          %s187 = smul.u32 8, %s23
          %s189 = ssub.s32 1024, 1024
          %190 = vsyncadd %s183, %s189
          %s191 = sadd.s32 %s25, %s187
          %s192 = smul.addr %s191, 128
          %s193 = scalar_lea.hbm %s0, %s192
          %s194 = sshll.u32 %s186, 4
          %s195 = int_to_ptr.vmem [resolvable:$true] %s194
          %200 = dma.hbm_to_vmem [thread:$0]  %s193, 1024, %s195, %s183, 128, 128, 8
        $region28: #{tpu_custom_call.1} parent=23 // pred_fallthru
          _
      $region24: #{tpu_custom_call.1} parent=5 // pred_fallthru
        _
      %p201 = scmp.le.s32.totalorder 1, %s16
      %p202 = scmp.lt.s32.totalorder %s16, 3
      %p203 = pnand %p201, %p202
      %p204 = pneg %p203
      // Predicated region
      $region29: #{tpu_custom_call.1} parent=5 // pred_check
        _
      $region30: #{tpu_custom_call.1} parent=5 // pred_check_branch
        %206 = sbr.rel (%p203) target = $region32
      $region31: #{tpu_custom_call.1} parent=5 // pred_region
        %s207 = ssub.s32 %s16, 1
        %s208 = sand.u32 %s50, 1
        %s209 = scalar_lea.sflag [#allocation4], %s208
        %s210 = sand.u32 %s50, 1
        %s211 = smul.addr %s210, 64
        %s212 = scalar_lea.vmem [#allocation3], %s211
        // Predicated region
        $region33: #{tpu_custom_call.1} parent=31 // pred_check
          %p213 = pneg %p63
        $region34: #{tpu_custom_call.1} parent=31 // pred_check_branch
          %215 = sbr.rel (%p213) target = $region36
        $region35: #{tpu_custom_call.1} parent=31 // pred_region
          %216 = dma.done %s209, 1024
        $region36: #{tpu_custom_call.1} parent=31 // pred_fallthru
          _
        // Predicated region
        $region37: #{tpu_custom_call.1} parent=31 // pred_check
          %p217 = pneg %p91
        $region38: #{tpu_custom_call.1} parent=31 // pred_check_branch
          %219 = sbr.rel (%p217) target = $region40
        $region39: #{tpu_custom_call.1} parent=31 // pred_region
          %220 = dma.done [#allocation7], 2048
        $region40: #{tpu_custom_call.1} parent=31 // pred_fallthru
          _
        %s221 = sand.u32 %s50, 1
        %s222 = scalar_lea.sflag [#allocation4], %s221
        %s223 = sand.u32 %s50, 1
        %s224 = smul.addr %s223, 64
        %s225 = scalar_lea.vmem [#allocation3], %s224
        %p226 = pneg %p63
        %p227 = pneg %p60
        %p228 = pneg %p91
        %p229 = pneg %p88
        %p230 = pneg %p112
        %p231 = pneg %p109
        %p232 = pneg %p140
        %p233 = pneg %p137
        %s234 = sand.u32 %s127, 1
        %s235 = scalar_lea.sflag [#allocation5], %s234
        %s236 = sand.u32 %s127, 1
        %s237 = smul.addr %s236, 64
        %s238 = scalar_lea.vmem [#allocation8], %s237
        %s239 = smul.u32 8, %s26
        %s240 = smul.u32 16, %s28
        %s241 = smul.u32 8, %s26
        %p242 = scmp.eq.s32.totalorder %s28, 0
        // Predicated region
        $region41: #{tpu_custom_call.1} parent=31 // pred_check
          %p243 = pneg %p242
        $region42: #{tpu_custom_call.1} parent=31 // pred_check_branch
          %245 = sbr.rel (%p243) target = $region44
        $region43: #{tpu_custom_call.1} parent=31 // pred_region
          %246 = vst [vmem:[#allocation2] sm:$0xff] 0.0
          %247 = vst [vmem:[#allocation2 + $0x8] sm:$0xff] 0.0
          %248 = vst [vmem:[#allocation2 + $0x10] sm:$0xff] 0.0
          %249 = vst [vmem:[#allocation2 + $0x18] sm:$0xff] 0.0
          %250 = vst [vmem:[#allocation2 + $0x20] sm:$0xff] 0.0
          %251 = vst [vmem:[#allocation2 + $0x28] sm:$0xff] 0.0
          %252 = vst [vmem:[#allocation2 + $0x30] sm:$0xff] 0.0
          %253 = vst [vmem:[#allocation2 + $0x38] sm:$0xff] 0.0
        $region44: #{tpu_custom_call.1} parent=31 // pred_fallthru
          _
        %v254 = vld [vmem:[#allocation2] sm:$0xff]
        %v255 = vld [vmem:[#allocation2 + $0x8] sm:$0xff]
        %v256 = vld [vmem:[#allocation2 + $0x10] sm:$0xff]
        %v257 = vld [vmem:[#allocation2 + $0x18] sm:$0xff]
        %v258 = vld [vmem:[#allocation2 + $0x20] sm:$0xff]
        %v259 = vld [vmem:[#allocation2 + $0x28] sm:$0xff]
        %v260 = vld [vmem:[#allocation2 + $0x30] sm:$0xff]
        %v261 = vld [vmem:[#allocation2 + $0x38] sm:$0xff]
        %v262 = vld [vmem:[%s212] sm:$0xff]
        %v263 = vld [vmem:[%s212 + $0x8] sm:$0xff]
        %v264 = vld [vmem:[%s212 + $0x10] sm:$0xff]
        %v265 = vld [vmem:[%s212 + $0x18] sm:$0xff]
        %v266 = vld [vmem:[%s212 + $0x20] sm:$0xff]
        %v267 = vld [vmem:[%s212 + $0x28] sm:$0xff]
        %v268 = vld [vmem:[%s212 + $0x30] sm:$0xff]
        %v269 = vld [vmem:[%s212 + $0x38] sm:$0xff]
        %v270 = vld [vmem:[#allocation6] sm:$0xff]
        %v271 = vld [vmem:[#allocation6 + $0x8] sm:$0xff]
        %v272 = vld [vmem:[#allocation6 + $0x10] sm:$0xff]
        %v273 = vld [vmem:[#allocation6 + $0x18] sm:$0xff]
        %v274 = vld [vmem:[#allocation6 + $0x20] sm:$0xff]
        %v275 = vld [vmem:[#allocation6 + $0x28] sm:$0xff]
        %v276 = vld [vmem:[#allocation6 + $0x30] sm:$0xff]
        %v277 = vld [vmem:[#allocation6 + $0x38] sm:$0xff]
        %v278 = vld [vmem:[#allocation6 + $0x40] sm:$0xff]
        %v279 = vld [vmem:[#allocation6 + $0x48] sm:$0xff]
        %v280 = vld [vmem:[#allocation6 + $0x50] sm:$0xff]
        %v281 = vld [vmem:[#allocation6 + $0x58] sm:$0xff]
        %v282 = vld [vmem:[#allocation6 + $0x60] sm:$0xff]
        %v283 = vld [vmem:[#allocation6 + $0x68] sm:$0xff]
        %v284 = vld [vmem:[#allocation6 + $0x70] sm:$0xff]
        %v285 = vld [vmem:[#allocation6 + $0x78] sm:$0xff]
        %286 = vmatprep.subr.mxu0 0.0
        %287 = vmatpush1.msra.mxu0 %v270
        %288 = vmatprep.subr.mxu0 0.0
        %289 = vmatpush1.msra.mxu0 %v271
        %290 = vmatprep.subr.mxu0 0.0
        %291 = vmatpush1.msra.mxu0 %v272
        %292 = vmatprep.subr.mxu0 0.0
        %293 = vmatpush1.msra.mxu0 %v273
        %294 = vmatprep.subr.mxu0 0.0
        %295 = vmatpush1.msra.mxu0 %v274
        %296 = vmatprep.subr.mxu0 0.0
        %297 = vmatpush1.msra.mxu0 %v275
        %298 = vmatprep.subr.mxu0 0.0
        %299 = vmatpush1.msra.mxu0 %v276
        %300 = vmatprep.subr.mxu0 0.0
        %301 = vmatpush1.msra.mxu0 %v277
        %302 = vmatprep.subr.mxu0 0.0
        %303 = vmatpush1.msra.mxu0 %v278
        %304 = vmatprep.subr.mxu0 0.0
        %305 = vmatpush1.msra.mxu0 %v279
        %306 = vmatprep.subr.mxu0 0.0
        %307 = vmatpush1.msra.mxu0 %v280
        %308 = vmatprep.subr.mxu0 0.0
        %309 = vmatpush1.msra.mxu0 %v281
        %310 = vmatprep.subr.mxu0 0.0
        %311 = vmatpush1.msra.mxu0 %v282
        %312 = vmatprep.subr.mxu0 0.0
        %313 = vmatpush1.msra.mxu0 %v283
        %314 = vmatprep.subr.mxu0 0.0
        %315 = vmatpush1.msra.mxu0 %v284
        %316 = vmatprep.subr.mxu0 0.0
        %317 = vmatpush1.msra.mxu0 %v285
        %318 = vmatprep.subr.mxu0 0.0
        %319 = vmatpush1.msra.mxu0 0.0
        %320 = vmatprep.subr.mxu0 0.0
        %321 = vmatpush1.msra.mxu0 0.0
        %322 = vmatprep.subr.mxu0 0.0
        %323 = vmatpush1.msra.mxu0 0.0
        %324 = vmatprep.subr.mxu0 0.0
        %325 = vmatpush1.msra.mxu0 0.0
        %326 = vmatprep.subr.mxu0 0.0
        %327 = vmatpush1.msra.mxu0 0.0
        %328 = vmatprep.subr.mxu0 0.0
        %329 = vmatpush1.msra.mxu0 0.0
        %330 = vmatprep.subr.mxu0 0.0
        %331 = vmatpush1.msra.mxu0 0.0
        %332 = vmatprep.subr.mxu0 0.0
        %333 = vmatpush1.msra.mxu0 0.0
        %334 = vmatprep.subr.mxu0 0.0
        %335 = vmatpush1.msra.mxu0 0.0
        %336 = vmatprep.subr.mxu0 0.0
        %337 = vmatpush1.msra.mxu0 0.0
        %338 = vmatprep.subr.mxu0 0.0
        %339 = vmatpush1.msra.mxu0 0.0
        %340 = vmatprep.subr.mxu0 0.0
        %341 = vmatpush1.msra.mxu0 0.0
        %342 = vmatprep.subr.mxu0 0.0
        %343 = vmatpush1.msra.mxu0 0.0
        %344 = vmatprep.subr.mxu0 0.0
        %345 = vmatpush1.msra.mxu0 0.0
        %346 = vmatprep.subr.mxu0 0.0
        %347 = vmatpush1.msra.mxu0 0.0
        %348 = vmatprep.subr.mxu0 0.0
        %349 = vmatpush1.msra.mxu0 0.0
        %350 = vmatprep.mubr.f32.mxu0 0.0
        %351 = vmatmul.mubr.f32.gmra.mrb[0].mxu0 %v262
        %v352 = vpop.f32.mrb[0].mxu0
        %v353 = vadd.f32 0.0, %v352
        %v354 = vpop.f32.mrb[0].mxu0
        %355 = vmatprep.mubr.f32.mxu0 0.0
        %356 = vmatmul.mubr.f32.gmra.mrb[0].mxu0 %v263
        %v357 = vpop.f32.mrb[0].mxu0
        %v358 = vadd.f32 0.0, %v357
        %v359 = vpop.f32.mrb[0].mxu0
        %360 = vmatprep.mubr.f32.mxu0 0.0
        %361 = vmatmul.mubr.f32.gmra.mrb[0].mxu0 %v264
        %v362 = vpop.f32.mrb[0].mxu0
        %v363 = vadd.f32 0.0, %v362
        %v364 = vpop.f32.mrb[0].mxu0
        %365 = vmatprep.mubr.f32.mxu0 0.0
        %366 = vmatmul.mubr.f32.gmra.mrb[0].mxu0 %v265
        %v367 = vpop.f32.mrb[0].mxu0
        %v368 = vadd.f32 0.0, %v367
        %v369 = vpop.f32.mrb[0].mxu0
        %370 = vmatprep.mubr.f32.mxu0 0.0
        %371 = vmatmul.mubr.f32.gmra.mrb[0].mxu0 %v266
        %v372 = vpop.f32.mrb[0].mxu0
        %v373 = vadd.f32 0.0, %v372
        %v374 = vpop.f32.mrb[0].mxu0
        %375 = vmatprep.mubr.f32.mxu0 0.0
        %376 = vmatmul.mubr.f32.gmra.mrb[0].mxu0 %v267
        %v377 = vpop.f32.mrb[0].mxu0
        %v378 = vadd.f32 0.0, %v377
        %v379 = vpop.f32.mrb[0].mxu0
        %380 = vmatprep.mubr.f32.mxu0 0.0
        %381 = vmatmul.mubr.f32.gmra.mrb[0].mxu0 %v268
        %v382 = vpop.f32.mrb[0].mxu0
        %v383 = vadd.f32 0.0, %v382
        %v384 = vpop.f32.mrb[0].mxu0
        %385 = vmatprep.mubr.f32.mxu0 0.0
        %386 = vmatmul.mubr.f32.gmra.mrb[0].mxu0 %v269
        %v387 = vpop.f32.mrb[0].mxu0
        %v388 = vadd.f32 0.0, %v387
        %v389 = vpop.f32.mrb[0].mxu0
        %390 = vdwg.mxu0
        %v391 = vadd.f32 %v254, %v353
        %v392 = vadd.f32 %v255, %v358
        %v393 = vadd.f32 %v256, %v363
        %v394 = vadd.f32 %v257, %v368
        %v395 = vadd.f32 %v258, %v373
        %v396 = vadd.f32 %v259, %v378
        %v397 = vadd.f32 %v260, %v383
        %v398 = vadd.f32 %v261, %v388
        %399 = vst [vmem:[#allocation2] sm:$0xff] %v391
        %400 = vst [vmem:[#allocation2 + $0x8] sm:$0xff] %v392
        %401 = vst [vmem:[#allocation2 + $0x10] sm:$0xff] %v393
        %402 = vst [vmem:[#allocation2 + $0x18] sm:$0xff] %v394
        %403 = vst [vmem:[#allocation2 + $0x20] sm:$0xff] %v395
        %404 = vst [vmem:[#allocation2 + $0x28] sm:$0xff] %v396
        %405 = vst [vmem:[#allocation2 + $0x30] sm:$0xff] %v397
        %406 = vst [vmem:[#allocation2 + $0x38] sm:$0xff] %v398
        // Predicated region
        $region45: #{tpu_custom_call.1} parent=31 // pred_check
          %p407 = pneg %p242
        $region46: #{tpu_custom_call.1} parent=31 // pred_check_branch
          %409 = sbr.rel (%p407) target = $region48
        $region47: #{tpu_custom_call.1} parent=31 // pred_region
          %v410 = vld [vmem:[#allocation2] sm:$0xff]
          %v411 = vld [vmem:[#allocation2 + $0x8] sm:$0xff]
          %v412 = vld [vmem:[#allocation2 + $0x10] sm:$0xff]
          %v413 = vld [vmem:[#allocation2 + $0x18] sm:$0xff]
          %v414 = vld [vmem:[#allocation2 + $0x20] sm:$0xff]
          %v415 = vld [vmem:[#allocation2 + $0x28] sm:$0xff]
          %v416 = vld [vmem:[#allocation2 + $0x30] sm:$0xff]
          %v417 = vld [vmem:[#allocation2 + $0x38] sm:$0xff]
          %v418 = vld [vmem:[%s2] sm:$0x1]
          %v420 = vlaneseq
          %v421 = vshrl.u32 %v420, 7
          %v422 = vsub.s32 0, %v421
          %v423 = vrot.slane %v418, %v422
          %v425 = vadd.f32 %v410, %v423
          %v426 = vadd.f32 %v411, %v423
          %v427 = vadd.f32 %v412, %v423
          %v428 = vadd.f32 %v413, %v423
          %v429 = vadd.f32 %v414, %v423
          %v430 = vadd.f32 %v415, %v423
          %v431 = vadd.f32 %v416, %v423
          %v432 = vadd.f32 %v417, %v423
          %433 = vst [vmem:[%s238] sm:$0xff] %v425
          %434 = vst [vmem:[%s238 + $0x8] sm:$0xff] %v426
          %435 = vst [vmem:[%s238 + $0x10] sm:$0xff] %v427
          %436 = vst [vmem:[%s238 + $0x18] sm:$0xff] %v428
          %437 = vst [vmem:[%s238 + $0x20] sm:$0xff] %v429
          %438 = vst [vmem:[%s238 + $0x28] sm:$0xff] %v430
          %439 = vst [vmem:[%s238 + $0x30] sm:$0xff] %v431
          %440 = vst [vmem:[%s238 + $0x38] sm:$0xff] %v432
        $region48: #{tpu_custom_call.1} parent=31 // pred_fallthru
          _
        %s441 = sand.u32 %s127, 1
        %s442 = scalar_lea.sflag [#allocation5], %s441
        %s443 = sand.u32 %s127, 1
        %s444 = smul.addr %s443, 64
        %s445 = scalar_lea.vmem [#allocation8], %s444
        // Predicated region
        $region49: #{tpu_custom_call.1} parent=31 // pred_check
          %p446 = pneg %p137
        $region50: #{tpu_custom_call.1} parent=31 // pred_check_branch
          %448 = sbr.rel (%p446) target = $region52
        $region51: #{tpu_custom_call.1} parent=31 // pred_region
          %s449 = smul.u32 8, %s26
          %s451 = ssub.s32 1024, 1024
          %452 = vsyncadd %s442, %s451
          %s453 = sadd.s32 %s27, %s449
          %s454 = smul.addr %s453, 128
          %s455 = scalar_lea.hbm %s3, %s454
          %s456 = sshll.u32 %s445, 4
          %s457 = int_to_ptr.vmem [resolvable:$true] %s456
          %462 = dma.vmem_to_hbm [thread:$0]  %s457, 1024, %s455, %s442, 128, 128, 8
        $region52: #{tpu_custom_call.1} parent=31 // pred_fallthru
          _
      $region32: #{tpu_custom_call.1} parent=5 // pred_fallthru
        _
      %p463 = scmp.le.s32.totalorder 2, %s16
      // Predicated region
      $region53: #{tpu_custom_call.1} parent=5 // pred_check
        %p464 = pneg %p463
      $region54: #{tpu_custom_call.1} parent=5 // pred_check_branch
        %466 = sbr.rel (%p464) target = $region56
      $region55: #{tpu_custom_call.1} parent=5 // pred_region
        %s467 = ssub.s32 %s16, 2
        // Predicated region
        $region57: #{tpu_custom_call.1} parent=55 // pred_check
          %p468 = pneg %p143
        $region58: #{tpu_custom_call.1} parent=55 // pred_check_branch
          %470 = sbr.rel (%p468) target = $region60
        $region59: #{tpu_custom_call.1} parent=55 // pred_region
          %s471 = sand.u32 %s128, 1
          %s472 = scalar_lea.sflag [#allocation5], %s471
          %s473 = sand.u32 %s128, 1
          %s474 = smul.addr %s473, 64
          %s475 = scalar_lea.vmem [#allocation8], %s474
          %476 = dma.done %s472, 1024
        $region60: #{tpu_custom_call.1} parent=55 // pred_fallthru
          _
      $region56: #{tpu_custom_call.1} parent=5 // pred_fallthru
        _
    $region6: #{tpu_custom_call.1} parent=1 // loop_footer
      %s20 = sadd.s32 1, %s16
    $region7: #{tpu_custom_call.1} parent=1 // loop_footer_branch
      %15 = sbr.rel target = $region3
    $region8: #{tpu_custom_call.1} parent=1 // loop_exit
      _
    %477 = vsyncpa [#allocation4], 1
    %s478 = scalar_lea.sflag [#allocation4], 1
    %479 = vsyncpa %s478, 1
    %480 = vsyncpa [#allocation7], 1
    %481 = vsyncpa [#allocation5], 1
    %s482 = scalar_lea.sflag [#allocation5], 1
    %483 = vsyncpa %s482, 1

</llo_original>
